<compile_context>
chip_gen: v5e
topology: v5e:2x2
jax: 0.10.0
libtpu: 0.0.40
codegen_flags: <defaults>
</compile_context>

<pallas_src>
import functools

import jax
import jax.numpy as jnp
from jax.experimental import pallas as pl
from jax.experimental.pallas import tpu as pltpu


def _round_up(x: int, m: int) -> int:
    return (x + m - 1) // m * m


def _critic_kernel(h_ref, w1_ref, b1_ref, w2_ref, b2_ref, o_ref, *, hc, n_chunks):
    """One batch tile of the Critic forward.

    h_ref : [TB, F+A] bf16  streamed activation tile (x ++ att)
    w1_ref: [F+A, H]  bf16  resident fc1 weight, (in, out) layout
    b1_ref: [1, H]    f32   resident fc1 bias
    w2_ref: [1, H]    f32   resident fc2 weight (row layout)
    b2_ref: [1, 1]    f32   fc2 bias (SMEM scalar)
    o_ref : [TB, 1]   f32   output tile (used as the accumulator)
    """
    o_ref[...] = jnp.zeros_like(o_ref)

    # Process H in 128-lane-aligned slabs: only a [TB, hc] fc1 intermediate is
    # live at a time (never the full [TB, H] activation), which is what keeps
    # large batch tiles inside v7x's 64 MiB VMEM.
    @pl.loop(0, n_chunks)
    def _(c):
        s = pl.multiple_of(c * hc, hc)
        # fc1 slab: single bf16 MXU matmul with f32 accumulation.
        z = jnp.dot(h_ref[...], w1_ref[:, pl.ds(s, hc)],
                    preferred_element_type=jnp.float32)
        z = z + b1_ref[:, pl.ds(s, hc)]
        # LeakyReLU(0.2) in max form: 2 VALU ops/element instead of 3.
        a = jnp.maximum(z, 0.2 * z)
        # fc2 is an N=1 matvec: do it as a VPU multiply + XLU lane reduction,
        # keeping the MXU free for fc1, and accumulate the [TB,1] partial sum.
        o_ref[...] += jnp.sum(a * w2_ref[:, pl.ds(s, hc)], axis=-1, keepdims=True)

    o_ref[...] += b2_ref[0, 0]


def critic_forward(x, att, w1, b1, w2, b2, *, block_b: int = 512):
    """Fused Critic forward: LeakyReLU(cat(x, att) @ W1 + b1, 0.2) @ W2 + b2.

    x:   [B, F]    float32
    att: [B, A]    float32
    w1:  [F+A, H]  fc1 weight, pre-transposed to (in, out)
    b1:  [H] or [1, H]
    w2:  [H, 1]    fc2 weight, pre-transposed to (in, out)
    b2:  [1] or [1, 1]
    returns [B, 1] float32
    """
    assert block_b % 8 == 0
    B, F = x.shape
    A = att.shape[1]
    K = F + A
    H = w1.shape[1]
    assert w1.shape[0] == K

    # Fuse concat + bf16 cast into one cheap XLA op outside the kernel: the
    # kernel then needs a single matmul stream (no second dot, no [TB,H] add)
    # and the activation DMA moves half the bytes.  Accumulation stays f32.
    h = jnp.concatenate([x, att], axis=1).astype(jnp.bfloat16)      # [B, K]
    w1_bf = jnp.asarray(w1).astype(jnp.bfloat16)                    # [K, H]
    b1_row = jnp.asarray(b1, jnp.float32).reshape(1, H)
    w2_row = jnp.asarray(w2, jnp.float32).reshape(1, H)
    b2_sc = jnp.asarray(b2, jnp.float32).reshape(1, 1)

    # Batch tile: large enough to amortize per-grid-step overhead and MXU
    # weight reloads.  No wrapper-side padding: the partial tail block is
    # handled (and its garbage rows masked) by Pallas.
    tb = block_b if B >= block_b else _round_up(B, 8)
    grid = (pl.cdiv(B, tb),)

    # H slab size: lane-aligned, at most 1024 columns (falls back to H itself
    # if H has no aligned divisor, i.e. a single slab).
    hc = next(c for c in (1024, 512, 256, 128, H) if H % c == 0)
    n_chunks = H // hc

    kernel = functools.partial(_critic_kernel, hc=hc, n_chunks=n_chunks)

    out = pl.pallas_call(
        kernel,
        out_shape=jax.ShapeDtypeStruct((B, 1), jnp.float32),
        grid_spec=pltpu.PrefetchScalarGridSpec(
            num_scalar_prefetch=0,
            grid=grid,
            in_specs=[
                pl.BlockSpec((tb, K), lambda i: (i, 0)),            # activations (streamed)
                pl.BlockSpec((K, H), lambda i: (0, 0)),             # W1 (VMEM-resident)
                pl.BlockSpec((1, H), lambda i: (0, 0)),             # b1 (VMEM-resident)
                pl.BlockSpec((1, H), lambda i: (0, 0)),             # w2 row (VMEM-resident)
                pl.BlockSpec(memory_space=pltpu.MemorySpace.SMEM),  # b2 scalar (SMEM)
            ],
            out_specs=pl.BlockSpec((tb, 1), lambda i: (i, 0)),
        ),
        compiler_params=pltpu.CompilerParams(
            # Batch tiles are independent: shard across TensorCores (v7x has 2).
            dimension_semantics=("parallel",),
            # 48 MiB fits v7x's 64 MiB physical VMEM with headroom and is ample
            # on v5e/v6e; the H-chunked body keeps per-tile intermediates small
            # so even block_b=1024 stays well inside this budget.
            vmem_limit_bytes=48 * 1024 * 1024,
        ),
    )(h, w1_bf, b1_row, w2_row, b2_sc)

    return out


if __name__ == "__main__":
    # Small, TPU-friendly shapes consistent with the module signature.
    B = 16
    n_features = 32
    n_attributes = 16
    hidden_size = 128

    key = jax.random.PRNGKey(0)
    kx, ka, kw1, kw2 = jax.random.split(key, 4)

    x = jax.random.normal(kx, (B, n_features), dtype=jnp.float32)
    att = jax.random.normal(ka, (B, n_attributes), dtype=jnp.float32)

    # Deterministic init matching PyTorch's init_weights:
    #   Linear.weight ~ N(0, 0.02), Linear.bias = 0  (stored as (in, out)).
    w1 = 0.02 * jax.random.normal(
        kw1, (n_features + n_attributes, hidden_size), dtype=jnp.float32)
    b1 = jnp.zeros((hidden_size,), dtype=jnp.float32)
    w2 = 0.02 * jax.random.normal(kw2, (hidden_size, 1), dtype=jnp.float32)
    b2 = jnp.zeros((1,), dtype=jnp.float32)

    def reference(xr, attr):
        hcat = jnp.concatenate([xr, attr], axis=1)
        z1 = hcat @ w1 + b1[None, :]
        a1 = jnp.where(z1 >= 0.0, z1, 0.2 * z1)
        return a1 @ w2 + b2[None, :]

    # Single-tile path (block equals the full, aligned batch).
    out = jax.block_until_ready(critic_forward(x, att, w1, b1, w2, b2))
    ref = reference(x, att)
    assert out.shape == (B, 1)
    # bf16 MXU operands => relaxed tolerance vs. the f32 reference.
    assert jnp.allclose(out, ref, atol=2e-3, rtol=2e-2), \
        float(jnp.max(jnp.abs(out - ref)))

    # Multi-tile grid with a partial tail block (no wrapper-side padding).
    B2 = 300
    kx2, ka2 = jax.random.split(jax.random.PRNGKey(1), 2)
    x2 = jax.random.normal(kx2, (B2, n_features), dtype=jnp.float32)
    att2 = jax.random.normal(ka2, (B2, n_attributes), dtype=jnp.float32)
    out2 = jax.block_until_ready(
        critic_forward(x2, att2, w1, b1, w2, b2, block_b=128))
    ref2 = reference(x2, att2)
    assert out2.shape == (B2, 1)
    assert jnp.allclose(out2, ref2, atol=2e-3, rtol=2e-2), \
        float(jnp.max(jnp.abs(out2 - ref2)))

    print("KERNEL_OK")
</pallas_src>

<mosaic_0001>
module attributes {stable_mosaic.version = 11 : i64} {
  func.func @_critic_kernel(%arg0: i32, %arg1: memref<16x48xbf16, #tpu.memory_space<vmem>>, %arg2: memref<48x128xbf16, #tpu.memory_space<vmem>>, %arg3: memref<1x128xf32, #tpu.memory_space<vmem>>, %arg4: memref<1x128xf32, #tpu.memory_space<vmem>>, %arg5: memref<1x1xf32, #tpu.memory_space<smem>>, %arg6: memref<16x1xf32, #tpu.memory_space<vmem>>) attributes {dimension_semantics = [#tpu.dimension_semantics<parallel>], iteration_bounds = array<i64: 1>, scalar_prefetch = 0 : i64, scratch_operands = 0 : i64, tpu.core_type = #tpu.core_type<tc>, window_params = [{transform_indices = @transform_0, window_bounds = array<i64: 16, 48>}, {pipeline_mode = #tpu.pipeline_mode<synchronous>, transform_indices = @transform_1, window_bounds = array<i64: 48, 128>}, {pipeline_mode = #tpu.pipeline_mode<synchronous>, transform_indices = @transform_2, window_bounds = array<i64: 1, 128>}, {pipeline_mode = #tpu.pipeline_mode<synchronous>, transform_indices = @transform_3, window_bounds = array<i64: 1, 128>}, {transform_indices = @transform_4, window_bounds = array<i64: 1, 1>}, {transform_indices = @transform_5, window_bounds = array<i64: 16, 1>}]} {
    %cst = arith.constant 0.000000e+00 : f32
    %0 = vector.broadcast %cst : f32 to vector<16x1xf32>
    %c0 = arith.constant 0 : index
    %c0_0 = arith.constant 0 : index
    %1 = vector.load %arg6[%c0, %c0_0] : memref<16x1xf32, #tpu.memory_space<vmem>>, vector<16x1xf32>
    tpu.vector_store %arg6[%c0, %c0_0], %0 {strides = array<i32>} : memref<16x1xf32, #tpu.memory_space<vmem>>, vector<16x1xf32>,
    %c0_i32 = arith.constant 0 : i32
    %c1_i32 = arith.constant 1 : i32
    %2 = arith.muli %c0_i32, %c1_i32 : i32
    %c0_i32_1 = arith.constant 0 : i32
    %3 = arith.addi %c0_i32_1, %2 : i32
    %c128_i32 = arith.constant 128 : i32
    %4 = arith.muli %3, %c128_i32 : i32
    %5 = tpu.assume_multiple %4, 128 : i32
    %c0_2 = arith.constant 0 : index
    %c0_3 = arith.constant 0 : index
    %6 = vector.load %arg1[%c0_2, %c0_3] : memref<16x48xbf16, #tpu.memory_space<vmem>>, vector<16x48xbf16>
    %c0_4 = arith.constant 0 : index
    %7 = arith.index_cast %5 : i32 to index
    %8 = vector.load %arg2[%c0_4, %7] : memref<48x128xbf16, #tpu.memory_space<vmem>>, vector<48x128xbf16>
    %cst_5 = arith.constant dense<0.000000e+00> : vector<16x128xf32>
    %9 = tpu.matmul %6, %8, %cst_5 {dimension_numbers = #tpu.dot_dimension_numbers<[1], [0], [0], [1], [0, 0, 1, 1], [], []>} : vector<16x48xbf16>, vector<48x128xbf16>, vector<16x128xf32> -> vector<16x128xf32>
    %c0_6 = arith.constant 0 : index
    %10 = arith.index_cast %5 : i32 to index
    %11 = vector.load %arg3[%c0_6, %10] : memref<1x128xf32, #tpu.memory_space<vmem>>, vector<1x128xf32>
    %12 = vector.broadcast %11 : vector<1x128xf32> to vector<16x128xf32>
    %13 = arith.addf %9, %12 : vector<16x128xf32>
    %cst_7 = arith.constant 2.000000e-01 : f32
    %14 = vector.broadcast %cst_7 : f32 to vector<16x128xf32>
    %15 = arith.mulf %14, %13 : vector<16x128xf32>
    %16 = arith.maximumf %13, %15 : vector<16x128xf32>
    %c0_8 = arith.constant 0 : index
    %c0_9 = arith.constant 0 : index
    %17 = vector.load %arg6[%c0_8, %c0_9] : memref<16x1xf32, #tpu.memory_space<vmem>>, vector<16x1xf32>
    %c0_10 = arith.constant 0 : index
    %18 = arith.index_cast %5 : i32 to index
    %19 = vector.load %arg4[%c0_10, %18] : memref<1x128xf32, #tpu.memory_space<vmem>>, vector<1x128xf32>
    %20 = vector.broadcast %19 : vector<1x128xf32> to vector<16x128xf32>
    %21 = arith.mulf %16, %20 : vector<16x128xf32>
    %cst_11 = arith.constant dense<0.000000e+00> : vector<16xf32>
    %22 = vector.multi_reduction <add>, %21, %cst_11 [1] : vector<16x128xf32> to vector<16xf32>
    %23 = vector.shape_cast %22 : vector<16xf32> to vector<16x1xf32>
    %24 = arith.addf %17, %23 : vector<16x1xf32>
    %c0_12 = arith.constant 0 : index
    %c0_13 = arith.constant 0 : index
    %25 = vector.load %arg6[%c0_12, %c0_13] : memref<16x1xf32, #tpu.memory_space<vmem>>, vector<16x1xf32>
    tpu.vector_store %arg6[%c0_12, %c0_13], %24 {strides = array<i32>} : memref<16x1xf32, #tpu.memory_space<vmem>>, vector<16x1xf32>,
    %c1_i32_14 = arith.constant 1 : i32
    %c0_15 = arith.constant 0 : index
    %c0_16 = arith.constant 0 : index
    %26 = vector.load %arg6[%c0_15, %c0_16] : memref<16x1xf32, #tpu.memory_space<vmem>>, vector<16x1xf32>
    %c0_17 = arith.constant 0 : index
    %c0_18 = arith.constant 0 : index
    %27 = memref.load %arg5[%c0_17, %c0_18] : memref<1x1xf32, #tpu.memory_space<smem>>
    %28 = vector.broadcast %27 : f32 to vector<16x1xf32>
    %29 = arith.addf %26, %28 : vector<16x1xf32>
    %c0_19 = arith.constant 0 : index
    %c0_20 = arith.constant 0 : index
    %30 = vector.load %arg6[%c0_19, %c0_20] : memref<16x1xf32, #tpu.memory_space<vmem>>, vector<16x1xf32>
    tpu.vector_store %arg6[%c0_19, %c0_20], %29 {strides = array<i32>} : memref<16x1xf32, #tpu.memory_space<vmem>>, vector<16x1xf32>,
    return
  }
  func.func @transform_0(%arg0: i32) -> (i32, i32) {
    %c0_i32 = arith.constant 0 : i32
    %c0_i32_0 = arith.constant 0 : i32
    return %arg0, %c0_i32 : i32, i32
  }
  func.func @transform_1(%arg0: i32) -> (i32, i32) {
    %c0_i32 = arith.constant 0 : i32
    %c0_i32_0 = arith.constant 0 : i32
    %c0_i32_1 = arith.constant 0 : i32
    return %c0_i32, %c0_i32_0 : i32, i32
  }
  func.func @transform_2(%arg0: i32) -> (i32, i32) {
    %c0_i32 = arith.constant 0 : i32
    %c0_i32_0 = arith.constant 0 : i32
    %c0_i32_1 = arith.constant 0 : i32
    return %c0_i32, %c0_i32_0 : i32, i32
  }
  func.func @transform_3(%arg0: i32) -> (i32, i32) {
    %c0_i32 = arith.constant 0 : i32
    %c0_i32_0 = arith.constant 0 : i32
    %c0_i32_1 = arith.constant 0 : i32
    return %c0_i32, %c0_i32_0 : i32, i32
  }
  func.func @transform_4(%arg0: i32) -> (i32, i32) {
    %c0_i32 = arith.constant 0 : i32
    %c0_i32_0 = arith.constant 0 : i32
    %c0_i32_1 = arith.constant 0 : i32
    return %c0_i32, %c0_i32_0 : i32, i32
  }
  func.func @transform_5(%arg0: i32) -> (i32, i32) {
    %c0_i32 = arith.constant 0 : i32
    %c0_i32_0 = arith.constant 0 : i32
    return %arg0, %c0_i32 : i32, i32
  }
}

</mosaic_0001>

<llo_original>
// kernel: tpu_custom_call.1
$region0: #{tpu_custom_call.1}
  #allocation0 [shape = 'u32[]', space=smem, size = 0x4, offset = 0x4, fixed_abs, tag = 'smem constant byte address 0x4 - core index']
  #allocation1 [shape = 'u32[72,128]{1,0:T(1,128)}', space=vmem, size = 0x9000, scoped, tag = 'internal scratch']
  #allocation2 [shape = 'f32[1,1]{1,0:T(1,128)S(6)}', space=smem, size = 0x200, scoped, tag = 'scoped memory for tpu_custom_call.1']
  %s0 = inlined_call_operand.hbm [shape: bf16[16,48], index: 0, kind: input, shape index: {}]
  %s1 = inlined_call_operand.hbm [shape: bf16[48,128], index: 1, kind: input, shape index: {}]
  %s2 = inlined_call_operand.vmem [shape: f32[1,128], index: 2, kind: input, shape index: {}]
  %s3 = inlined_call_operand.vmem [shape: f32[1,128], index: 3, kind: input, shape index: {}]
  %s4 = inlined_call_operand.<no memory space> [shape: f32[1,1], index: 4, kind: input, shape index: {}]
  %s5 = inlined_call_operand.vmem [shape: f32[16,1], index: 5, kind: output, shape index: {}]
  %s6 = sld [smem:[#allocation0]]
  $region38: #{tpu_custom_call.1} parent=0
    _
  %s8 = ssub.s32 1, %s6
  %s9 = scalar_select 0, %s8, %s6
  %10 = sst [smem:[#allocation2]] %s4
  $region1: #{tpu_custom_call.1} parent=0
    #allocation3 [shape = 'u8[4096]{0}', space=vmem, size = 0x1000, scoped, tag = 'input window, operand 0, single buffered']
    #allocation4 [shape = 's32[1]{0}', space=sflag, size = 0x4, scoped, tag = 'scoped memory for tpu_custom_call.1']
    #allocation5 [shape = 'u8[12288]{0}', space=vmem, size = 0x3000, scoped, tag = 'input window, operand 1, single buffered']
    #allocation6 [shape = 's32[1]{0}', space=sflag, size = 0x4, scoped, tag = 'scoped memory for tpu_custom_call.1']
    %11 = vsyncpa [#allocation4], 0
    %12 = vsyncpa [#allocation6], 0
    // Predicated region
    $region2: #{tpu_custom_call.1} parent=1 // pred_check
      _
    $region3: #{tpu_custom_call.1} parent=1 // pred_check_branch
      %14 = sbr.rel (0) target = $region5
    $region4: #{tpu_custom_call.1} parent=1 // pred_region
      %16 = vsyncadd [#allocation4], 0
      %s17 = sshll.u32 %s0, 4
      %s18 = int_to_ptr.hbm [resolvable:$true] %s17
      %s19 = sshll.u32 [#allocation3], 4
      %s20 = int_to_ptr.vmem [resolvable:$true] %s19
      %25 = dma.hbm_to_vmem [thread:$0]  %s18, 128, %s20, [#allocation4], 64, 64, 4
    $region5: #{tpu_custom_call.1} parent=1 // pred_fallthru
      _
    // Predicated region
    $region6: #{tpu_custom_call.1} parent=1 // pred_check
      _
    $region7: #{tpu_custom_call.1} parent=1 // pred_check_branch
      %27 = sbr.rel (0) target = $region9
    $region8: #{tpu_custom_call.1} parent=1 // pred_region
      %29 = vsyncadd [#allocation6], 0
      %s30 = sshll.u32 %s1, 4
      %s31 = int_to_ptr.hbm [resolvable:$true] %s30
      %s32 = sshll.u32 [#allocation5], 4
      %s33 = int_to_ptr.vmem [resolvable:$true] %s32
      %38 = dma.hbm_to_vmem [thread:$0]  %s31, 384, %s33, [#allocation6], 64, 64, 4
    $region9: #{tpu_custom_call.1} parent=1 // pred_fallthru
      _
    // Predicated region
    $region10: #{tpu_custom_call.1} parent=1 // pred_check
      _
    $region11: #{tpu_custom_call.1} parent=1 // pred_check_branch
      %40 = sbr.rel (0) target = $region13
    $region12: #{tpu_custom_call.1} parent=1 // pred_region
      _
    $region13: #{tpu_custom_call.1} parent=1 // pred_fallthru
      _
    // Predicated region
    $region14: #{tpu_custom_call.1} parent=1 // pred_check
      _
    $region15: #{tpu_custom_call.1} parent=1 // pred_check_branch
      %42 = sbr.rel (0) target = $region17
    $region16: #{tpu_custom_call.1} parent=1 // pred_region
      _
    $region17: #{tpu_custom_call.1} parent=1 // pred_fallthru
      _
    // Predicated region
    $region18: #{tpu_custom_call.1} parent=1 // pred_check
      _
    $region19: #{tpu_custom_call.1} parent=1 // pred_check_branch
      %44 = sbr.rel (0) target = $region21
    $region20: #{tpu_custom_call.1} parent=1 // pred_region
      _
    $region21: #{tpu_custom_call.1} parent=1 // pred_fallthru
      _
    // Predicated region
    $region22: #{tpu_custom_call.1} parent=1 // pred_check
      _
    $region23: #{tpu_custom_call.1} parent=1 // pred_check_branch
      %46 = sbr.rel (0) target = $region25
    $region24: #{tpu_custom_call.1} parent=1 // pred_region
      %48 = dma.done [#allocation4], 128
    $region25: #{tpu_custom_call.1} parent=1 // pred_fallthru
      _
    // Predicated region
    $region26: #{tpu_custom_call.1} parent=1 // pred_check
      _
    $region27: #{tpu_custom_call.1} parent=1 // pred_check_branch
      %50 = sbr.rel (0) target = $region29
    $region28: #{tpu_custom_call.1} parent=1 // pred_region
      %52 = dma.done [#allocation6], 384
    $region29: #{tpu_custom_call.1} parent=1 // pred_fallthru
      _
    %vm54 = vcmask 7168
    %55 = vst.msk [vmem:[%s5] sm:$0xff] %vm54, 0.0
    %56 = vst.msk [vmem:[%s5 + $0x8] sm:$0xff] %vm54, 0.0
    %v57 = vld [vmem:[#allocation3] sm:$0xf]
    %v58 = vld [vmem:[#allocation3 + $0x4] sm:$0xf]
    %v59 = vld [vmem:[#allocation5] sm:$0xf]
    %v60 = vld [vmem:[#allocation5 + $0x4] sm:$0xf]
    %v61 = vld [vmem:[#allocation5 + $0x8] sm:$0xf]
    %v62 = vld [vmem:[#allocation5 + $0xc] sm:$0xf]
    %v63 = vld [vmem:[#allocation5 + $0x10] sm:$0xf]
    %v64 = vld [vmem:[#allocation5 + $0x14] sm:$0xf]
    %v65 = vld [vmem:[%s2] sm:$0x1]
    %v67 = vperm.slane %v65, 0
    %v71 = vunpack.c.l.b16 %v57
    %v72 = vunpack.c.l.b16 %v58
    %v73 = vpack.c.b16 %v72, %v71
    %v80 = vunpack.c.l.b16 %v59
    %v81 = vunpack.c.l.b16 %v60
    %v82 = vunpack.c.l.b16 %v61
    %v83 = vunpack.c.l.b16 %v62
    %v84 = vunpack.c.l.b16 %v63
    %v85 = vunpack.c.l.b16 %v64
    %v86 = vpack.c.b16 %v81, %v80
    %v87 = vpack.c.b16 %v83, %v82
    %v88 = vpack.c.b16 %v85, %v84
    %vm92 = vcmask 392192
    %v94 = vsel %vm92, %v73, 0
    %96 = vmatpush.bf16.msra.mxu0 0
    %97 = vmatpush.bf16.msra.mxu0 0
    %98 = vmatpush.bf16.msra.mxu0 0
    %99 = vmatpush.bf16.msra.mxu0 0
    %100 = vmatpush.bf16.msra.mxu0 0
    %101 = vmatpush.bf16.msra.mxu0 %v88
    %102 = vmatpush.bf16.msra.mxu0 %v87
    %103 = vmatpush.bf16.msra.mxu0 %v86
    %104 = vmatmul.bf16.gmra.mxu0 %v94
    %v105 = vpop.f32.mrf.mxu0
    %v106 = vadd.f32 %v67, %v105
    %v107 = vpop.f32.mrf.mxu0
    %v108 = vadd.f32 %v67, %v107
    %109 = vdwg.mxu0
    %v110 = vmul.f32 %v106, 0.2
    %v111 = vmul.f32 %v108, 0.2
    %v112 = vmax.f32 %v106, %v110
    %v113 = vmax.f32 %v108, %v111
    %v114 = vld [vmem:[%s5] sm:$0xff]
    %v115 = vld [vmem:[%s5 + $0x8] sm:$0xff]
    %v116 = vld [vmem:[%s3] sm:$0x1]
    %v118 = vperm.slane %v116, 0
    %v120 = vmul.f32 %v112, %v118
    %v121 = vmul.f32 %v113, %v118
    %122 = vadd.xlane.f32.xlu0 %v120
    %v123 = vpop.xlane.xlu0 %122
    %124 = vadd.xlane.f32.xlu0 %v121
    %v125 = vpop.xlane.xlu0 %124
    %v126 = vadd.f32 %v114, %v123
    %v127 = vadd.f32 %v115, %v125
    %128 = vst.msk [vmem:[%s5] sm:$0xff] %vm54, %v126
    %129 = vst.msk [vmem:[%s5 + $0x8] sm:$0xff] %vm54, %v127
    %v130 = vld [vmem:[%s5] sm:$0xff]
    %v131 = vld [vmem:[%s5 + $0x8] sm:$0xff]
    %s132 = sld [smem:[#allocation2]]
    %v133 = vstv %s132
    %v134 = vadd.f32 %v130, %v133
    %v135 = vadd.f32 %v131, %v133
    %136 = vst.msk [vmem:[%s5] sm:$0xff] %vm54, %v134
    %137 = vst.msk [vmem:[%s5 + $0x8] sm:$0xff] %vm54, %v135
    // Predicated region
    $region30: #{tpu_custom_call.1} parent=1 // pred_check
      _
    $region31: #{tpu_custom_call.1} parent=1 // pred_check_branch
      %139 = sbr.rel (0) target = $region33
    $region32: #{tpu_custom_call.1} parent=1 // pred_region
      _
    $region33: #{tpu_custom_call.1} parent=1 // pred_fallthru
      _
    // Predicated region
    $region34: #{tpu_custom_call.1} parent=1 // pred_check
      _
    $region35: #{tpu_custom_call.1} parent=1 // pred_check_branch
      %141 = sbr.rel (0) target = $region37
    $region36: #{tpu_custom_call.1} parent=1 // pred_region
      _
    $region37: #{tpu_custom_call.1} parent=1 // pred_fallthru
      _
    %142 = vsyncpa [#allocation4], 1
    %143 = vsyncpa [#allocation6], 1

</llo_original>
